<compile_context>
chip_gen: v7x
topology: tpu7x:2x2x1
jax: 0.10.0
libtpu: 0.0.40
codegen_flags: <defaults>
</compile_context>

<pallas_src>
import jax
import jax.numpy as jnp
from jax.experimental import pallas as pl
from jax.experimental.pallas import tpu as pltpu


def oib_kernel(hid_ref, cov_ref, orig_ref,
               w_out_ref, b_out_ref, w_cov_ref, b_cov_ref,
               w1h_ref, w1c_ref, b1_ref, w2_ref, b2_ref,
               out_ref):
    # In-kernel bf16 cast of the streamed activations (no wrapper-side pass).
    hid = hid_ref[...].astype(jnp.bfloat16)                       # (TM, d_model)
    cov = cov_ref[...].astype(jnp.bfloat16)                       # (TM, cov_dim)

    # Input projections + ReLU (separate matmuls: no block-diag zero FLOPs).
    h = jnp.dot(hid, w_out_ref[...], preferred_element_type=jnp.float32)
    h = jnp.maximum(h + b_out_ref[...], 0.0)                      # (TM, H)
    c = jnp.dot(cov, w_cov_ref[...], preferred_element_type=jnp.float32)
    c = jnp.maximum(c + b_cov_ref[...], 0.0)                      # (TM, H)

    # FFN.linear1 on concat([h, c]) == h @ w1h + c @ w1c, then ReLU.
    z = (jnp.dot(h.astype(jnp.bfloat16), w1h_ref[...],
                 preferred_element_type=jnp.float32)
         + jnp.dot(c.astype(jnp.bfloat16), w1c_ref[...],
                   preferred_element_type=jnp.float32)
         + b1_ref[...])
    z = jnp.maximum(z, 0.0)                                       # (TM, Hf)

    # FFN.linear2 -> adjustment, fused residual add (unpadded out_dim lanes).
    adj = jnp.dot(z.astype(jnp.bfloat16), w2_ref[...],
                  preferred_element_type=jnp.float32) + b2_ref[...]
    out_ref[...] = (orig_ref[...].astype(jnp.float32) + adj).astype(out_ref.dtype)


def _round_up(x, m):
    return (x + m - 1) // m * m


def _oib_rows(hid2d, cov2d, orig2d, params, *, tm_max=1024):
    """Run the kernel over row-major 2-D streams. Returns (M, out_dim)."""
    M, d_model = hid2d.shape
    cov_dim = cov2d.shape[-1]
    out_dim = orig2d.shape[-1]
    (w_out, b_out, w_cov, b_cov, w1h, w1c, b1, w2, b2) = params
    H = w_out.shape[1]
    Hf = w1h.shape[1]

    # Row tile: >=2 tiles whenever possible (v7x megacore), multiple of 8,
    # up to tm_max to amortize per-step pipeline overhead.  Partial last tile
    # is handled by Pallas (garbage rows are computed but never written back).
    if M <= 8:
        TM = M                                   # block == full dim (legal)
    else:
        TM = max(8, min(tm_max, _round_up(pl.cdiv(M, 2), 8)))
    n_tiles = pl.cdiv(M, TM)

    # One-time bf16 casts of the (small, VMEM-resident) weights.
    w_out_bf = w_out.astype(jnp.bfloat16)
    w_cov_bf = w_cov.astype(jnp.bfloat16)
    w1h_bf = w1h.astype(jnp.bfloat16)
    w1c_bf = w1c.astype(jnp.bfloat16)
    w2_bf = w2.astype(jnp.bfloat16)

    def rows(last):          # streamed: new row-block each grid step
        return pl.BlockSpec((TM, last), lambda i: (i, 0))

    def resident(arr):       # weights/biases: same block every step
        return pl.BlockSpec(arr.shape, lambda i: (0, 0))

    flops = 2 * M * (d_model * H + cov_dim * H + 2 * H * Hf + Hf * out_dim)
    bytes_accessed = (4 * M * (d_model + cov_dim + 2 * out_dim)
                      + 2 * (w_out_bf.size + w_cov_bf.size + w1h_bf.size
                             + w1c_bf.size + w2_bf.size)
                      + 4 * (b_out.size + b_cov.size + b1.size + b2.size))

    return pl.pallas_call(
        oib_kernel,
        out_shape=jax.ShapeDtypeStruct((M, out_dim), orig2d.dtype),
        grid=(n_tiles,),
        in_specs=[
            rows(d_model), rows(cov_dim), rows(out_dim),
            resident(w_out_bf), resident(b_out),
            resident(w_cov_bf), resident(b_cov),
            resident(w1h_bf), resident(w1c_bf), resident(b1),
            resident(w2_bf), resident(b2),
        ],
        out_specs=rows(out_dim),
        compiler_params=pltpu.CompilerParams(
            dimension_semantics=("parallel",),
            vmem_limit_bytes=48 * 1024 * 1024),
        cost_estimate=pl.CostEstimate(
            flops=flops, transcendentals=0, bytes_accessed=bytes_accessed),
    )(hid2d, cov2d, orig2d,
      w_out_bf, b_out, w_cov_bf, b_cov, w1h_bf, w1c_bf, b1, w2_bf, b2)


def output_injection_block(hidden_states, future_covariates, original_outputs, params):
    """Pallas implementation of OutputInjectionBlock.forward."""
    if future_covariates is None:
        return original_outputs

    # Sequence-length-mismatch branch of the PyTorch module (shapes are static
    # in JAX, so this is plain Python control flow).
    if (original_outputs.ndim == 3
            and original_outputs.shape[1] != hidden_states.shape[1]):
        hidden_states = hidden_states[:, -1:, :]
        if future_covariates.shape[1] != 1:
            future_covariates = future_covariates.mean(axis=1, keepdims=True)

    B, S, d_model = hidden_states.shape
    cov_dim = future_covariates.shape[-1]
    out_dim = original_outputs.shape[-1]
    M = B * S

    hid2d = hidden_states.reshape(M, d_model)
    cov2d = future_covariates.reshape(M, cov_dim)

    if original_outputs.ndim == 3 and original_outputs.shape[1] == S:
        # Main path: residual add fused inside the kernel.
        orig2d = original_outputs.reshape(M, out_dim)
        out = _oib_rows(hid2d, cov2d, orig2d, params)
        return out.reshape(B, S, out_dim)

    # Mismatch path: kernel computes the adjustment (zero residual stream of
    # only B*out_dim elements), then broadcast-add like the PyTorch module.
    zeros = jnp.zeros((M, out_dim), original_outputs.dtype)
    adjustment = _oib_rows(hid2d, cov2d, zeros, params).reshape(B, S, out_dim)
    if adjustment.shape != original_outputs.shape:
        if (original_outputs.ndim == 3
                and original_outputs.shape[1] != adjustment.shape[1]):
            adjustment = adjustment.reshape(B, -1, original_outputs.shape[-1])
    return original_outputs + adjustment


def init_params(key, d_model, covariate_dim, output_dim, hidden_dim, ffn_hidden):
    """Deterministic synthetic parameters. PyTorch Linear (out,in) weights are
    stored transposed as (in,out). FFN.linear1 is split into its hidden / cov
    halves (equivalent to one (2H, Hf) weight acting on concat([h, c]))."""
    ks = jax.random.split(key, 9)
    scale = 0.05
    w_out = scale * jax.random.normal(ks[0], (d_model, hidden_dim), jnp.float32)
    b_out = scale * jax.random.normal(ks[1], (1, hidden_dim), jnp.float32)
    w_cov = scale * jax.random.normal(ks[2], (covariate_dim, hidden_dim), jnp.float32)
    b_cov = scale * jax.random.normal(ks[3], (1, hidden_dim), jnp.float32)
    w1h = scale * jax.random.normal(ks[4], (hidden_dim, ffn_hidden), jnp.float32)
    w1c = scale * jax.random.normal(ks[5], (hidden_dim, ffn_hidden), jnp.float32)
    b1 = scale * jax.random.normal(ks[6], (1, ffn_hidden), jnp.float32)
    w2 = scale * jax.random.normal(ks[7], (ffn_hidden, output_dim), jnp.float32)
    b2 = scale * jax.random.normal(ks[8], (1, output_dim), jnp.float32)
    # NOTE: forecasting_head exists in __init__ but is unused in forward; omitted.
    return (w_out, b_out, w_cov, b_cov, w1h, w1c, b1, w2, b2)


def reference_forward(hidden_states, future_covariates, original_outputs, params):
    (w_out, b_out, w_cov, b_cov, w1h, w1c, b1, w2, b2) = params
    hp = jnp.maximum(hidden_states @ w_out + b_out[0], 0.0)
    cp = jnp.maximum(future_covariates @ w_cov + b_cov[0], 0.0)
    z = jnp.maximum(hp @ w1h + cp @ w1c + b1[0], 0.0)
    adj = z @ w2 + b2[0]
    return original_outputs + adj


if __name__ == "__main__":
    B, S = 2, 8
    d_model, covariate_dim, output_dim = 32, 16, 8
    hidden_dim, ffn_hidden = 64, 64  # module default hidden is 256; kept small here

    key = jax.random.PRNGKey(0)
    k_h, k_c, k_o, k_p = jax.random.split(key, 4)

    hidden_states = jax.random.normal(k_h, (B, S, d_model), jnp.float32)
    future_covariates = jax.random.normal(k_c, (B, S, covariate_dim), jnp.float32)
    original_outputs = jax.random.normal(k_o, (B, S, output_dim), jnp.float32)

    params = init_params(k_p, d_model, covariate_dim, output_dim,
                         hidden_dim, ffn_hidden)

    # --- main path (matching sequence lengths, residual fused in-kernel) ---
    out = output_injection_block(hidden_states, future_covariates,
                                 original_outputs, params)
    out = jax.block_until_ready(out)
    ref = reference_forward(hidden_states, future_covariates,
                            original_outputs, params)
    assert out.shape == (B, S, output_dim)
    # bf16 matmul operands (f32 accumulation) -> loosened tolerance vs f32 reference.
    assert jnp.allclose(out, ref, atol=2e-2, rtol=2e-2), \
        f"max abs err {jnp.max(jnp.abs(out - ref))}"

    # --- sequence-length-mismatch path (last hidden step / mean covariates) ---
    S_o = 4
    orig_mis = jax.random.normal(jax.random.PRNGKey(1), (B, S_o, output_dim),
                                 jnp.float32)
    out_mis = output_injection_block(hidden_states, future_covariates,
                                     orig_mis, params)
    out_mis = jax.block_until_ready(out_mis)
    hid_last = hidden_states[:, -1:, :]
    cov_mean = future_covariates.mean(axis=1, keepdims=True)
    adj_ref = reference_forward(hid_last, cov_mean,
                                jnp.zeros((B, 1, output_dim), jnp.float32), params)
    ref_mis = orig_mis + adj_ref
    assert out_mis.shape == (B, S_o, output_dim)
    assert jnp.allclose(out_mis, ref_mis, atol=2e-2, rtol=2e-2), \
        f"max abs err {jnp.max(jnp.abs(out_mis - ref_mis))}"

    print("KERNEL_OK")
</pallas_src>

<mosaic_0001>
module attributes {stable_mosaic.version = 11 : i64} {
  func.func @oib_kernel(%arg0: i32, %arg1: memref<8x32xf32, #tpu.memory_space<vmem>>, %arg2: memref<8x16xf32, #tpu.memory_space<vmem>>, %arg3: memref<8x8xf32, #tpu.memory_space<vmem>>, %arg4: memref<32x64xbf16, #tpu.memory_space<vmem>>, %arg5: memref<1x64xf32, #tpu.memory_space<vmem>>, %arg6: memref<16x64xbf16, #tpu.memory_space<vmem>>, %arg7: memref<1x64xf32, #tpu.memory_space<vmem>>, %arg8: memref<64x64xbf16, #tpu.memory_space<vmem>>, %arg9: memref<64x64xbf16, #tpu.memory_space<vmem>>, %arg10: memref<1x64xf32, #tpu.memory_space<vmem>>, %arg11: memref<64x8xbf16, #tpu.memory_space<vmem>>, %arg12: memref<1x8xf32, #tpu.memory_space<vmem>>, %arg13: memref<8x8xf32, #tpu.memory_space<vmem>>) attributes {dimension_semantics = [#tpu.dimension_semantics<parallel>], iteration_bounds = array<i64: 2>, scalar_prefetch = 0 : i64, scratch_operands = 0 : i64, tpu.core_type = #tpu.core_type<tc>, window_params = [{transform_indices = @transform_0, window_bounds = array<i64: 8, 32>}, {transform_indices = @transform_1, window_bounds = array<i64: 8, 16>}, {transform_indices = @transform_2, window_bounds = array<i64: 8, 8>}, {pipeline_mode = #tpu.pipeline_mode<synchronous>, transform_indices = @transform_3, window_bounds = array<i64: 32, 64>}, {pipeline_mode = #tpu.pipeline_mode<synchronous>, transform_indices = @transform_4, window_bounds = array<i64: 1, 64>}, {pipeline_mode = #tpu.pipeline_mode<synchronous>, transform_indices = @transform_5, window_bounds = array<i64: 16, 64>}, {pipeline_mode = #tpu.pipeline_mode<synchronous>, transform_indices = @transform_6, window_bounds = array<i64: 1, 64>}, {pipeline_mode = #tpu.pipeline_mode<synchronous>, transform_indices = @transform_7, window_bounds = array<i64: 64, 64>}, {pipeline_mode = #tpu.pipeline_mode<synchronous>, transform_indices = @transform_8, window_bounds = array<i64: 64, 64>}, {pipeline_mode = #tpu.pipeline_mode<synchronous>, transform_indices = @transform_9, window_bounds = array<i64: 1, 64>}, {pipeline_mode = #tpu.pipeline_mode<synchronous>, transform_indices = @transform_10, window_bounds = array<i64: 64, 8>}, {pipeline_mode = #tpu.pipeline_mode<synchronous>, transform_indices = @transform_11, window_bounds = array<i64: 1, 8>}, {transform_indices = @transform_12, window_bounds = array<i64: 8, 8>}]} {
    %c0 = arith.constant 0 : index
    %c0_0 = arith.constant 0 : index
    %0 = vector.load %arg1[%c0, %c0_0] : memref<8x32xf32, #tpu.memory_space<vmem>>, vector<8x32xf32>
    %1 = arith.truncf %0 : vector<8x32xf32> to vector<8x32xbf16>
    %c0_1 = arith.constant 0 : index
    %c0_2 = arith.constant 0 : index
    %2 = vector.load %arg2[%c0_1, %c0_2] : memref<8x16xf32, #tpu.memory_space<vmem>>, vector<8x16xf32>
    %3 = arith.truncf %2 : vector<8x16xf32> to vector<8x16xbf16>
    %c0_3 = arith.constant 0 : index
    %c0_4 = arith.constant 0 : index
    %4 = vector.load %arg4[%c0_3, %c0_4] : memref<32x64xbf16, #tpu.memory_space<vmem>>, vector<32x64xbf16>
    %cst = arith.constant dense<0.000000e+00> : vector<8x64xf32>
    %5 = tpu.matmul %1, %4, %cst {dimension_numbers = #tpu.dot_dimension_numbers<[1], [0], [0], [1], [0, 0, 1, 1], [], []>} : vector<8x32xbf16>, vector<32x64xbf16>, vector<8x64xf32> -> vector<8x64xf32>
    %c0_5 = arith.constant 0 : index
    %c0_6 = arith.constant 0 : index
    %6 = vector.load %arg5[%c0_5, %c0_6] : memref<1x64xf32, #tpu.memory_space<vmem>>, vector<1x64xf32>
    %7 = vector.broadcast %6 : vector<1x64xf32> to vector<8x64xf32>
    %8 = arith.addf %5, %7 : vector<8x64xf32>
    %cst_7 = arith.constant 0.000000e+00 : f32
    %9 = vector.broadcast %cst_7 : f32 to vector<8x64xf32>
    %10 = arith.maximumf %8, %9 : vector<8x64xf32>
    %c0_8 = arith.constant 0 : index
    %c0_9 = arith.constant 0 : index
    %11 = vector.load %arg6[%c0_8, %c0_9] : memref<16x64xbf16, #tpu.memory_space<vmem>>, vector<16x64xbf16>
    %cst_10 = arith.constant dense<0.000000e+00> : vector<8x64xf32>
    %12 = tpu.matmul %3, %11, %cst_10 {dimension_numbers = #tpu.dot_dimension_numbers<[1], [0], [0], [1], [0, 0, 1, 1], [], []>} : vector<8x16xbf16>, vector<16x64xbf16>, vector<8x64xf32> -> vector<8x64xf32>
    %c0_11 = arith.constant 0 : index
    %c0_12 = arith.constant 0 : index
    %13 = vector.load %arg7[%c0_11, %c0_12] : memref<1x64xf32, #tpu.memory_space<vmem>>, vector<1x64xf32>
    %14 = vector.broadcast %13 : vector<1x64xf32> to vector<8x64xf32>
    %15 = arith.addf %12, %14 : vector<8x64xf32>
    %cst_13 = arith.constant 0.000000e+00 : f32
    %16 = vector.broadcast %cst_13 : f32 to vector<8x64xf32>
    %17 = arith.maximumf %15, %16 : vector<8x64xf32>
    %18 = arith.truncf %10 : vector<8x64xf32> to vector<8x64xbf16>
    %c0_14 = arith.constant 0 : index
    %c0_15 = arith.constant 0 : index
    %19 = vector.load %arg8[%c0_14, %c0_15] : memref<64x64xbf16, #tpu.memory_space<vmem>>, vector<64x64xbf16>
    %cst_16 = arith.constant dense<0.000000e+00> : vector<8x64xf32>
    %20 = tpu.matmul %18, %19, %cst_16 {dimension_numbers = #tpu.dot_dimension_numbers<[1], [0], [0], [1], [0, 0, 1, 1], [], []>} : vector<8x64xbf16>, vector<64x64xbf16>, vector<8x64xf32> -> vector<8x64xf32>
    %21 = arith.truncf %17 : vector<8x64xf32> to vector<8x64xbf16>
    %c0_17 = arith.constant 0 : index
    %c0_18 = arith.constant 0 : index
    %22 = vector.load %arg9[%c0_17, %c0_18] : memref<64x64xbf16, #tpu.memory_space<vmem>>, vector<64x64xbf16>
    %cst_19 = arith.constant dense<0.000000e+00> : vector<8x64xf32>
    %23 = tpu.matmul %21, %22, %cst_19 {dimension_numbers = #tpu.dot_dimension_numbers<[1], [0], [0], [1], [0, 0, 1, 1], [], []>} : vector<8x64xbf16>, vector<64x64xbf16>, vector<8x64xf32> -> vector<8x64xf32>
    %24 = arith.addf %20, %23 : vector<8x64xf32>
    %c0_20 = arith.constant 0 : index
    %c0_21 = arith.constant 0 : index
    %25 = vector.load %arg10[%c0_20, %c0_21] : memref<1x64xf32, #tpu.memory_space<vmem>>, vector<1x64xf32>
    %26 = vector.broadcast %25 : vector<1x64xf32> to vector<8x64xf32>
    %27 = arith.addf %24, %26 : vector<8x64xf32>
    %cst_22 = arith.constant 0.000000e+00 : f32
    %28 = vector.broadcast %cst_22 : f32 to vector<8x64xf32>
    %29 = arith.maximumf %27, %28 : vector<8x64xf32>
    %30 = arith.truncf %29 : vector<8x64xf32> to vector<8x64xbf16>
    %c0_23 = arith.constant 0 : index
    %c0_24 = arith.constant 0 : index
    %31 = vector.load %arg11[%c0_23, %c0_24] : memref<64x8xbf16, #tpu.memory_space<vmem>>, vector<64x8xbf16>
    %cst_25 = arith.constant dense<0.000000e+00> : vector<8x8xf32>
    %32 = tpu.matmul %30, %31, %cst_25 {dimension_numbers = #tpu.dot_dimension_numbers<[1], [0], [0], [1], [0, 0, 1, 1], [], []>} : vector<8x64xbf16>, vector<64x8xbf16>, vector<8x8xf32> -> vector<8x8xf32>
    %c0_26 = arith.constant 0 : index
    %c0_27 = arith.constant 0 : index
    %33 = vector.load %arg12[%c0_26, %c0_27] : memref<1x8xf32, #tpu.memory_space<vmem>>, vector<1x8xf32>
    %34 = vector.broadcast %33 : vector<1x8xf32> to vector<8x8xf32>
    %35 = arith.addf %32, %34 : vector<8x8xf32>
    %c0_28 = arith.constant 0 : index
    %c0_29 = arith.constant 0 : index
    %36 = vector.load %arg3[%c0_28, %c0_29] : memref<8x8xf32, #tpu.memory_space<vmem>>, vector<8x8xf32>
    %37 = arith.addf %36, %35 : vector<8x8xf32>
    %c0_30 = arith.constant 0 : index
    %c0_31 = arith.constant 0 : index
    %38 = vector.load %arg13[%c0_30, %c0_31] : memref<8x8xf32, #tpu.memory_space<vmem>>, vector<8x8xf32>
    tpu.vector_store %arg13[%c0_30, %c0_31], %37 {strides = array<i32>} : memref<8x8xf32, #tpu.memory_space<vmem>>, vector<8x8xf32>,
    return
  }
  func.func @transform_0(%arg0: i32) -> (i32, i32) {
    %c0_i32 = arith.constant 0 : i32
    %c0_i32_0 = arith.constant 0 : i32
    return %arg0, %c0_i32 : i32, i32
  }
  func.func @transform_1(%arg0: i32) -> (i32, i32) {
    %c0_i32 = arith.constant 0 : i32
    %c0_i32_0 = arith.constant 0 : i32
    return %arg0, %c0_i32 : i32, i32
  }
  func.func @transform_2(%arg0: i32) -> (i32, i32) {
    %c0_i32 = arith.constant 0 : i32
    %c0_i32_0 = arith.constant 0 : i32
    return %arg0, %c0_i32 : i32, i32
  }
  func.func @transform_3(%arg0: i32) -> (i32, i32) {
    %c0_i32 = arith.constant 0 : i32
    %c0_i32_0 = arith.constant 0 : i32
    %c0_i32_1 = arith.constant 0 : i32
    return %c0_i32, %c0_i32_0 : i32, i32
  }
  func.func @transform_4(%arg0: i32) -> (i32, i32) {
    %c0_i32 = arith.constant 0 : i32
    %c0_i32_0 = arith.constant 0 : i32
    %c0_i32_1 = arith.constant 0 : i32
    return %c0_i32, %c0_i32_0 : i32, i32
  }
  func.func @transform_5(%arg0: i32) -> (i32, i32) {
    %c0_i32 = arith.constant 0 : i32
    %c0_i32_0 = arith.constant 0 : i32
    %c0_i32_1 = arith.constant 0 : i32
    return %c0_i32, %c0_i32_0 : i32, i32
  }
  func.func @transform_6(%arg0: i32) -> (i32, i32) {
    %c0_i32 = arith.constant 0 : i32
    %c0_i32_0 = arith.constant 0 : i32
    %c0_i32_1 = arith.constant 0 : i32
    return %c0_i32, %c0_i32_0 : i32, i32
  }
  func.func @transform_7(%arg0: i32) -> (i32, i32) {
    %c0_i32 = arith.constant 0 : i32
    %c0_i32_0 = arith.constant 0 : i32
    %c0_i32_1 = arith.constant 0 : i32
    return %c0_i32, %c0_i32_0 : i32, i32
  }
  func.func @transform_8(%arg0: i32) -> (i32, i32) {
    %c0_i32 = arith.constant 0 : i32
    %c0_i32_0 = arith.constant 0 : i32
    %c0_i32_1 = arith.constant 0 : i32
    return %c0_i32, %c0_i32_0 : i32, i32
  }
  func.func @transform_9(%arg0: i32) -> (i32, i32) {
    %c0_i32 = arith.constant 0 : i32
    %c0_i32_0 = arith.constant 0 : i32
    %c0_i32_1 = arith.constant 0 : i32
    return %c0_i32, %c0_i32_0 : i32, i32
  }
  func.func @transform_10(%arg0: i32) -> (i32, i32) {
    %c0_i32 = arith.constant 0 : i32
    %c0_i32_0 = arith.constant 0 : i32
    %c0_i32_1 = arith.constant 0 : i32
    return %c0_i32, %c0_i32_0 : i32, i32
  }
  func.func @transform_11(%arg0: i32) -> (i32, i32) {
    %c0_i32 = arith.constant 0 : i32
    %c0_i32_0 = arith.constant 0 : i32
    %c0_i32_1 = arith.constant 0 : i32
    return %c0_i32, %c0_i32_0 : i32, i32
  }
  func.func @transform_12(%arg0: i32) -> (i32, i32) {
    %c0_i32 = arith.constant 0 : i32
    %c0_i32_0 = arith.constant 0 : i32
    return %arg0, %c0_i32 : i32, i32
  }
}

</mosaic_0001>

<llo_original>
// kernel: tpu_custom_call.1
$region0: #{tpu_custom_call.1}
  #allocation0 [shape = 'u32[]', space=smem, size = 0x4, offset = 0x4, fixed_abs, tag = 'smem constant byte address 0x4 - core index']
  #allocation1 [shape = 'u32[144,128]{1,0:T(1,128)}', space=vmem, size = 0x12000, scoped, tag = 'internal scratch']
  %s0 = inlined_call_operand.hbm [shape: f32[16,32], index: 0, kind: input, shape index: {}]
  %s1 = inlined_call_operand.hbm [shape: f32[16,16], index: 1, kind: input, shape index: {}]
  %s2 = inlined_call_operand.vmem [shape: f32[16,8], index: 2, kind: input, shape index: {}]
  %s3 = inlined_call_operand.hbm [shape: bf16[32,64], index: 3, kind: input, shape index: {}]
  %s4 = inlined_call_operand.vmem [shape: f32[1,64], index: 4, kind: input, shape index: {}]
  %s5 = inlined_call_operand.vmem [shape: bf16[16,64], index: 5, kind: input, shape index: {}]
  %s6 = inlined_call_operand.vmem [shape: f32[1,64], index: 6, kind: input, shape index: {}]
  %s7 = inlined_call_operand.vmem [shape: bf16[64,64], index: 7, kind: input, shape index: {}]
  %s8 = inlined_call_operand.vmem [shape: bf16[64,64], index: 8, kind: input, shape index: {}]
  %s9 = inlined_call_operand.vmem [shape: f32[1,64], index: 9, kind: input, shape index: {}]
  %s10 = inlined_call_operand.vmem [shape: bf16[64,8], index: 10, kind: input, shape index: {}]
  %s11 = inlined_call_operand.vmem [shape: f32[1,8], index: 11, kind: input, shape index: {}]
  %s12 = inlined_call_operand.vmem [shape: f32[16,8], index: 12, kind: output, shape index: {}]
  %s13 = sld [smem:[#allocation0]]
  $region93: #{tpu_custom_call.1} parent=0
    _
  %s15 = ssub.s32 1, %s13
  %s16 = scalar_select 0, %s15, %s13
  $region1: #{tpu_custom_call.1} parent=0
    #allocation2 [shape = 'u8[8192]{0}', space=vmem, size = 0x2000, scoped, tag = 'input window, operand 0']
    #allocation3 [shape = 's32[2]{0}', space=sflag, size = 0x8, scoped, tag = 'scoped memory for tpu_custom_call.1']
    #allocation4 [shape = 'u8[8192]{0}', space=vmem, size = 0x2000, scoped, tag = 'input window, operand 1']
    #allocation5 [shape = 's32[2]{0}', space=sflag, size = 0x8, scoped, tag = 'scoped memory for tpu_custom_call.1']
    #allocation6 [shape = 'u8[8192]{0}', space=vmem, size = 0x2000, scoped, tag = 'input window, operand 3, single buffered']
    %17 = vsyncpa [#allocation3], 0
    %s18 = scalar_lea.sflag [#allocation3], 1
    %19 = vsyncpa %s18, 0
    %20 = vsyncpa [#allocation5], 0
    %s21 = scalar_lea.sflag [#allocation5], 1
    %22 = vsyncpa %s21, 0
    loop: start=0, step=1, limit=4
    $region2: #{tpu_custom_call.1} parent=1 // loop_pre_header
      _
    $region3: #{tpu_custom_call.1} parent=1 // loop_header
      %s24 = sphi 0, %s28
      %p25 = scmp.ge.s32.totalorder %s24, 4
      %s34 = sphi 0, %s36
      %s37 = sphi 0, %s34
      %s38 = sphi 0, %s37
      %s54 = sphi 0, %s38
      %s60 = sphi 0, %s62
      %s63 = sphi 0, %s60
      %s64 = sphi 0, %s63
      %s80 = sphi 0, %s64
      %s86 = sphi 0, %s88
      %s89 = sphi 0, %s86
      %s90 = sphi 0, %s89
      %s106 = sphi 0, %s90
      %s110 = sphi 0, %s110
      %s112 = sphi 0, %s110
      %s113 = sphi 0, %s112
      %s127 = sphi 0, %s113
      %s131 = sphi 0, %s131
      %s133 = sphi 0, %s131
      %s134 = sphi 0, %s133
      %s148 = sphi 0, %s134
      %s152 = sphi 0, %s152
      %s154 = sphi 0, %s152
      %s155 = sphi 0, %s154
      %s169 = sphi 0, %s155
      %s173 = sphi 0, %s173
      %s175 = sphi 0, %s173
      %s176 = sphi 0, %s175
      %s190 = sphi 0, %s176
      %s194 = sphi 0, %s194
      %s196 = sphi 0, %s194
      %s197 = sphi 0, %s196
      %s211 = sphi 0, %s197
      %s215 = sphi 0, %s215
      %s217 = sphi 0, %s215
      %s218 = sphi 0, %s217
      %s232 = sphi 0, %s218
      %s236 = sphi 0, %s236
      %s238 = sphi 0, %s236
      %s239 = sphi 0, %s238
      %s253 = sphi 0, %s239
      %s257 = sphi 0, %s257
      %s259 = sphi 0, %s257
      %s260 = sphi 0, %s259
      %s274 = sphi 0, %s260
      %s278 = sphi 0, %s278
      %s280 = sphi 0, %s278
      %s281 = sphi 0, %s280
      %s295 = sphi 0, %s281
      %s301 = sphi 0, %s303
      %s304 = sphi 0, %s301
      %s305 = sphi 0, %s304
      %s321 = sphi 0, %s305
    $region4: #{tpu_custom_call.1} parent=1 // loop_header_branch
      %27 = sbr.rel (%p25) target = $region8
    $region5: #{tpu_custom_call.1} parent=1 // loop_body
      %s29 = ssub.s32 %s24, 1
      %s30 = ssub.s32 %s24, 2
      %s31 = sadd.s32 %s24, 1
      %s32 = ssub.s32 %s24, %s31
      %p33 = scmp.eq.s32.totalorder %s32, 0
      %s35 = sadd.s32 %s34, 1
      %s36 = scalar_select %p33, %s34, %s35
      %p39 = pneg %p33
      %p40 = scmp.eq.s32.totalorder %s24, 1
      %p41 = por %p39, %p40
      %p42 = scmp.ne.s32.totalorder %s34, %s37
      %p43 = scmp.eq.s32.totalorder %s24, 0
      %p44 = por %p42, %p43
      %p45 = scmp.ne.s32.totalorder %s34, %s37
      %p46 = scmp.eq.s32.totalorder %s29, 1
      %p47 = por %p45, %p46
      %p48 = scmp.ne.s32.totalorder %s37, %s38
      %p49 = scmp.eq.s32.totalorder %s29, 0
      %p50 = por %p48, %p49
      %p51 = scmp.ne.s32.totalorder %s37, %s38
      %p52 = scmp.eq.s32.totalorder %s30, 1
      %p53 = por %p51, %p52
      %p55 = scmp.ne.s32.totalorder %s38, %s54
      %p56 = scmp.eq.s32.totalorder %s30, 0
      %p57 = por %p55, %p56
      %s58 = ssub.s32 %s24, %s31
      %p59 = scmp.eq.s32.totalorder %s58, 0
      %s61 = sadd.s32 %s60, 1
      %s62 = scalar_select %p59, %s60, %s61
      %p65 = pneg %p59
      %p66 = scmp.eq.s32.totalorder %s24, 1
      %p67 = por %p65, %p66
      %p68 = scmp.ne.s32.totalorder %s60, %s63
      %p69 = scmp.eq.s32.totalorder %s24, 0
      %p70 = por %p68, %p69
      %p71 = scmp.ne.s32.totalorder %s60, %s63
      %p72 = scmp.eq.s32.totalorder %s29, 1
      %p73 = por %p71, %p72
      %p74 = scmp.ne.s32.totalorder %s63, %s64
      %p75 = scmp.eq.s32.totalorder %s29, 0
      %p76 = por %p74, %p75
      %p77 = scmp.ne.s32.totalorder %s63, %s64
      %p78 = scmp.eq.s32.totalorder %s30, 1
      %p79 = por %p77, %p78
      %p81 = scmp.ne.s32.totalorder %s64, %s80
      %p82 = scmp.eq.s32.totalorder %s30, 0
      %p83 = por %p81, %p82
      %s84 = ssub.s32 %s24, %s31
      %p85 = scmp.eq.s32.totalorder %s84, 0
      %s87 = sadd.s32 %s86, 1
      %s88 = scalar_select %p85, %s86, %s87
      %p91 = pneg %p85
      %p92 = scmp.eq.s32.totalorder %s24, 1
      %p93 = por %p91, %p92
      %p94 = scmp.ne.s32.totalorder %s86, %s89
      %p95 = scmp.eq.s32.totalorder %s24, 0
      %p96 = por %p94, %p95
      %p97 = scmp.ne.s32.totalorder %s86, %s89
      %p98 = scmp.eq.s32.totalorder %s29, 1
      %p99 = por %p97, %p98
      %p100 = scmp.ne.s32.totalorder %s89, %s90
      %p101 = scmp.eq.s32.totalorder %s29, 0
      %p102 = por %p100, %p101
      %p103 = scmp.ne.s32.totalorder %s89, %s90
      %p104 = scmp.eq.s32.totalorder %s30, 1
      %p105 = por %p103, %p104
      %p107 = scmp.ne.s32.totalorder %s90, %s106
      %p108 = scmp.eq.s32.totalorder %s30, 0
      %p109 = por %p107, %p108
      %s111 = sadd.s32 %s110, 1
      %p114 = scmp.eq.s32.totalorder %s24, 1
      %p115 = scmp.ne.s32.totalorder %s110, %s112
      %p116 = scmp.eq.s32.totalorder %s24, 0
      %p117 = por %p115, %p116
      %p118 = scmp.ne.s32.totalorder %s110, %s112
      %p119 = scmp.eq.s32.totalorder %s29, 1
      %p120 = por %p118, %p119
      %p121 = scmp.ne.s32.totalorder %s112, %s113
      %p122 = scmp.eq.s32.totalorder %s29, 0
      %p123 = por %p121, %p122
      %p124 = scmp.ne.s32.totalorder %s112, %s113
      %p125 = scmp.eq.s32.totalorder %s30, 1
      %p126 = por %p124, %p125
      %p128 = scmp.ne.s32.totalorder %s113, %s127
      %p129 = scmp.eq.s32.totalorder %s30, 0
      %p130 = por %p128, %p129
      %s132 = sadd.s32 %s131, 1
      %p135 = scmp.eq.s32.totalorder %s24, 1
      %p136 = scmp.ne.s32.totalorder %s131, %s133
      %p137 = scmp.eq.s32.totalorder %s24, 0
      %p138 = por %p136, %p137
      %p139 = scmp.ne.s32.totalorder %s131, %s133
      %p140 = scmp.eq.s32.totalorder %s29, 1
      %p141 = por %p139, %p140
      %p142 = scmp.ne.s32.totalorder %s133, %s134
      %p143 = scmp.eq.s32.totalorder %s29, 0
      %p144 = por %p142, %p143
      %p145 = scmp.ne.s32.totalorder %s133, %s134
      %p146 = scmp.eq.s32.totalorder %s30, 1
      %p147 = por %p145, %p146
      %p149 = scmp.ne.s32.totalorder %s134, %s148
      %p150 = scmp.eq.s32.totalorder %s30, 0
      %p151 = por %p149, %p150
      %s153 = sadd.s32 %s152, 1
      %p156 = scmp.eq.s32.totalorder %s24, 1
      %p157 = scmp.ne.s32.totalorder %s152, %s154
      %p158 = scmp.eq.s32.totalorder %s24, 0
      %p159 = por %p157, %p158
      %p160 = scmp.ne.s32.totalorder %s152, %s154
      %p161 = scmp.eq.s32.totalorder %s29, 1
      %p162 = por %p160, %p161
      %p163 = scmp.ne.s32.totalorder %s154, %s155
      %p164 = scmp.eq.s32.totalorder %s29, 0
      %p165 = por %p163, %p164
      %p166 = scmp.ne.s32.totalorder %s154, %s155
      %p167 = scmp.eq.s32.totalorder %s30, 1
      %p168 = por %p166, %p167
      %p170 = scmp.ne.s32.totalorder %s155, %s169
      %p171 = scmp.eq.s32.totalorder %s30, 0
      %p172 = por %p170, %p171
      %s174 = sadd.s32 %s173, 1
      %p177 = scmp.eq.s32.totalorder %s24, 1
      %p178 = scmp.ne.s32.totalorder %s173, %s175
      %p179 = scmp.eq.s32.totalorder %s24, 0
      %p180 = por %p178, %p179
      %p181 = scmp.ne.s32.totalorder %s173, %s175
      %p182 = scmp.eq.s32.totalorder %s29, 1
      %p183 = por %p181, %p182
      %p184 = scmp.ne.s32.totalorder %s175, %s176
      %p185 = scmp.eq.s32.totalorder %s29, 0
      %p186 = por %p184, %p185
      %p187 = scmp.ne.s32.totalorder %s175, %s176
      %p188 = scmp.eq.s32.totalorder %s30, 1
      %p189 = por %p187, %p188
      %p191 = scmp.ne.s32.totalorder %s176, %s190
      %p192 = scmp.eq.s32.totalorder %s30, 0
      %p193 = por %p191, %p192
      %s195 = sadd.s32 %s194, 1
      %p198 = scmp.eq.s32.totalorder %s24, 1
      %p199 = scmp.ne.s32.totalorder %s194, %s196
      %p200 = scmp.eq.s32.totalorder %s24, 0
      %p201 = por %p199, %p200
      %p202 = scmp.ne.s32.totalorder %s194, %s196
      %p203 = scmp.eq.s32.totalorder %s29, 1
      %p204 = por %p202, %p203
      %p205 = scmp.ne.s32.totalorder %s196, %s197
      %p206 = scmp.eq.s32.totalorder %s29, 0
      %p207 = por %p205, %p206
      %p208 = scmp.ne.s32.totalorder %s196, %s197
      %p209 = scmp.eq.s32.totalorder %s30, 1
      %p210 = por %p208, %p209
      %p212 = scmp.ne.s32.totalorder %s197, %s211
      %p213 = scmp.eq.s32.totalorder %s30, 0
      %p214 = por %p212, %p213
      %s216 = sadd.s32 %s215, 1
      %p219 = scmp.eq.s32.totalorder %s24, 1
      %p220 = scmp.ne.s32.totalorder %s215, %s217
      %p221 = scmp.eq.s32.totalorder %s24, 0
      %p222 = por %p220, %p221
      %p223 = scmp.ne.s32.totalorder %s215, %s217
      %p224 = scmp.eq.s32.totalorder %s29, 1
      %p225 = por %p223, %p224
      %p226 = scmp.ne.s32.totalorder %s217, %s218
      %p227 = scmp.eq.s32.totalorder %s29, 0
      %p228 = por %p226, %p227
      %p229 = scmp.ne.s32.totalorder %s217, %s218
      %p230 = scmp.eq.s32.totalorder %s30, 1
      %p231 = por %p229, %p230
      %p233 = scmp.ne.s32.totalorder %s218, %s232
      %p234 = scmp.eq.s32.totalorder %s30, 0
      %p235 = por %p233, %p234
      %s237 = sadd.s32 %s236, 1
      %p240 = scmp.eq.s32.totalorder %s24, 1
      %p241 = scmp.ne.s32.totalorder %s236, %s238
      %p242 = scmp.eq.s32.totalorder %s24, 0
      %p243 = por %p241, %p242
      %p244 = scmp.ne.s32.totalorder %s236, %s238
      %p245 = scmp.eq.s32.totalorder %s29, 1
      %p246 = por %p244, %p245
      %p247 = scmp.ne.s32.totalorder %s238, %s239
      %p248 = scmp.eq.s32.totalorder %s29, 0
      %p249 = por %p247, %p248
      %p250 = scmp.ne.s32.totalorder %s238, %s239
      %p251 = scmp.eq.s32.totalorder %s30, 1
      %p252 = por %p250, %p251
      %p254 = scmp.ne.s32.totalorder %s239, %s253
      %p255 = scmp.eq.s32.totalorder %s30, 0
      %p256 = por %p254, %p255
      %s258 = sadd.s32 %s257, 1
      %p261 = scmp.eq.s32.totalorder %s24, 1
      %p262 = scmp.ne.s32.totalorder %s257, %s259
      %p263 = scmp.eq.s32.totalorder %s24, 0
      %p264 = por %p262, %p263
      %p265 = scmp.ne.s32.totalorder %s257, %s259
      %p266 = scmp.eq.s32.totalorder %s29, 1
      %p267 = por %p265, %p266
      %p268 = scmp.ne.s32.totalorder %s259, %s260
      %p269 = scmp.eq.s32.totalorder %s29, 0
      %p270 = por %p268, %p269
      %p271 = scmp.ne.s32.totalorder %s259, %s260
      %p272 = scmp.eq.s32.totalorder %s30, 1
      %p273 = por %p271, %p272
      %p275 = scmp.ne.s32.totalorder %s260, %s274
      %p276 = scmp.eq.s32.totalorder %s30, 0
      %p277 = por %p275, %p276
      %s279 = sadd.s32 %s278, 1
      %p282 = scmp.eq.s32.totalorder %s24, 1
      %p283 = scmp.ne.s32.totalorder %s278, %s280
      %p284 = scmp.eq.s32.totalorder %s24, 0
      %p285 = por %p283, %p284
      %p286 = scmp.ne.s32.totalorder %s278, %s280
      %p287 = scmp.eq.s32.totalorder %s29, 1
      %p288 = por %p286, %p287
      %p289 = scmp.ne.s32.totalorder %s280, %s281
      %p290 = scmp.eq.s32.totalorder %s29, 0
      %p291 = por %p289, %p290
      %p292 = scmp.ne.s32.totalorder %s280, %s281
      %p293 = scmp.eq.s32.totalorder %s30, 1
      %p294 = por %p292, %p293
      %p296 = scmp.ne.s32.totalorder %s281, %s295
      %p297 = scmp.eq.s32.totalorder %s30, 0
      %p298 = por %p296, %p297
      %s299 = ssub.s32 %s24, %s31
      %p300 = scmp.eq.s32.totalorder %s299, 0
      %s302 = sadd.s32 %s301, 1
      %s303 = scalar_select %p300, %s301, %s302
      %p306 = pneg %p300
      %p307 = scmp.eq.s32.totalorder %s24, 1
      %p308 = por %p306, %p307
      %p309 = scmp.ne.s32.totalorder %s301, %s304
      %p310 = scmp.eq.s32.totalorder %s24, 0
      %p311 = por %p309, %p310
      %p312 = scmp.ne.s32.totalorder %s301, %s304
      %p313 = scmp.eq.s32.totalorder %s29, 1
      %p314 = por %p312, %p313
      %p315 = scmp.ne.s32.totalorder %s304, %s305
      %p316 = scmp.eq.s32.totalorder %s29, 0
      %p317 = por %p315, %p316
      %p318 = scmp.ne.s32.totalorder %s304, %s305
      %p319 = scmp.eq.s32.totalorder %s30, 1
      %p320 = por %p318, %p319
      %p322 = scmp.ne.s32.totalorder %s305, %s321
      %p323 = scmp.eq.s32.totalorder %s30, 0
      %p324 = por %p322, %p323
      %p325 = scmp.le.s32.totalorder 1, %s24
      %p326 = scmp.lt.s32.totalorder %s24, 3
      %p327 = pnand %p325, %p326
      %p328 = pneg %p327
      // Predicated region
      $region9: #{tpu_custom_call.1} parent=5 // pred_check
        _
      $region10: #{tpu_custom_call.1} parent=5 // pred_check_branch
        %330 = sbr.rel (%p327) target = $region12
      $region11: #{tpu_custom_call.1} parent=5 // pred_region
        %s331 = ssub.s32 %s24, 1
        // Predicated region
        $region13: #{tpu_custom_call.1} parent=11 // pred_check
          %p332 = pneg %p123
        $region14: #{tpu_custom_call.1} parent=11 // pred_check_branch
          %334 = sbr.rel (%p332) target = $region16
        $region15: #{tpu_custom_call.1} parent=11 // pred_region
          %s336 = ssub.s32 256, 256
          %337 = vsyncadd [#allocation5], %s336
          %s338 = sshll.u32 [#allocation6], 4
          %s339 = int_to_ptr.vmem [resolvable:$true] %s338
          %344 = dma.hbm_to_vmem [thread:$0]  %s3, 256, %s339, [#allocation5], 64, 64, 4
        $region16: #{tpu_custom_call.1} parent=11 // pred_fallthru
          _
        // Predicated region
        $region17: #{tpu_custom_call.1} parent=11 // pred_check
          %p345 = pneg %p144
        $region18: #{tpu_custom_call.1} parent=11 // pred_check_branch
          %347 = sbr.rel (%p345) target = $region20
        $region19: #{tpu_custom_call.1} parent=11 // pred_region
          _
        $region20: #{tpu_custom_call.1} parent=11 // pred_fallthru
          _
        // Predicated region
        $region21: #{tpu_custom_call.1} parent=11 // pred_check
          %p348 = pneg %p165
        $region22: #{tpu_custom_call.1} parent=11 // pred_check_branch
          %350 = sbr.rel (%p348) target = $region24
        $region23: #{tpu_custom_call.1} parent=11 // pred_region
          _
        $region24: #{tpu_custom_call.1} parent=11 // pred_fallthru
          _
        // Predicated region
        $region25: #{tpu_custom_call.1} parent=11 // pred_check
          %p351 = pneg %p186
        $region26: #{tpu_custom_call.1} parent=11 // pred_check_branch
          %353 = sbr.rel (%p351) target = $region28
        $region27: #{tpu_custom_call.1} parent=11 // pred_region
          _
        $region28: #{tpu_custom_call.1} parent=11 // pred_fallthru
          _
        // Predicated region
        $region29: #{tpu_custom_call.1} parent=11 // pred_check
          %p354 = pneg %p207
        $region30: #{tpu_custom_call.1} parent=11 // pred_check_branch
          %356 = sbr.rel (%p354) target = $region32
        $region31: #{tpu_custom_call.1} parent=11 // pred_region
          _
        $region32: #{tpu_custom_call.1} parent=11 // pred_fallthru
          _
        // Predicated region
        $region33: #{tpu_custom_call.1} parent=11 // pred_check
          %p357 = pneg %p228
        $region34: #{tpu_custom_call.1} parent=11 // pred_check_branch
          %359 = sbr.rel (%p357) target = $region36
        $region35: #{tpu_custom_call.1} parent=11 // pred_region
          _
        $region36: #{tpu_custom_call.1} parent=11 // pred_fallthru
          _
        // Predicated region
        $region37: #{tpu_custom_call.1} parent=11 // pred_check
          %p360 = pneg %p249
        $region38: #{tpu_custom_call.1} parent=11 // pred_check_branch
          %362 = sbr.rel (%p360) target = $region40
        $region39: #{tpu_custom_call.1} parent=11 // pred_region
          _
        $region40: #{tpu_custom_call.1} parent=11 // pred_fallthru
          _
        // Predicated region
        $region41: #{tpu_custom_call.1} parent=11 // pred_check
          %p363 = pneg %p270
        $region42: #{tpu_custom_call.1} parent=11 // pred_check_branch
          %365 = sbr.rel (%p363) target = $region44
        $region43: #{tpu_custom_call.1} parent=11 // pred_region
          _
        $region44: #{tpu_custom_call.1} parent=11 // pred_fallthru
          _
        // Predicated region
        $region45: #{tpu_custom_call.1} parent=11 // pred_check
          %p366 = pneg %p291
        $region46: #{tpu_custom_call.1} parent=11 // pred_check_branch
          %368 = sbr.rel (%p366) target = $region48
        $region47: #{tpu_custom_call.1} parent=11 // pred_region
          _
        $region48: #{tpu_custom_call.1} parent=11 // pred_fallthru
          _
      $region12: #{tpu_custom_call.1} parent=5 // pred_fallthru
        _
      %p369 = scmp.lt.s32.totalorder %s24, 2
      // Predicated region
      $region49: #{tpu_custom_call.1} parent=5 // pred_check
        %p370 = pneg %p369
      $region50: #{tpu_custom_call.1} parent=5 // pred_check_branch
        %372 = sbr.rel (%p370) target = $region52
      $region51: #{tpu_custom_call.1} parent=5 // pred_region
        // Predicated region
        $region53: #{tpu_custom_call.1} parent=51 // pred_check
          %p373 = pneg %p44
        $region54: #{tpu_custom_call.1} parent=51 // pred_check_branch
          %375 = sbr.rel (%p373) target = $region56
        $region55: #{tpu_custom_call.1} parent=51 // pred_region
          %s376 = sand.u32 %s34, 1
          %s377 = scalar_lea.sflag [#allocation3], %s376
          %s378 = sand.u32 %s34, 1
          %s379 = smul.addr %s378, 8
          %s380 = scalar_lea.vmem [#allocation2], %s379
          %s382 = ssub.s32 128, 128
          %383 = vsyncadd %s377, %s382
          %s384 = smul.addr %s24, 128
          %s385 = scalar_lea.hbm %s0, %s384
          %s387 = sshll.u32 %s380, 4
          %s388 = int_to_ptr.vmem [resolvable:$true] %s387
          %390 = dma.hbm_to_vmem [thread:$0]  %s385, 128, %s388, %s377
        $region56: #{tpu_custom_call.1} parent=51 // pred_fallthru
          _
        // Predicated region
        $region57: #{tpu_custom_call.1} parent=51 // pred_check
          %p391 = pneg %p70
        $region58: #{tpu_custom_call.1} parent=51 // pred_check_branch
          %393 = sbr.rel (%p391) target = $region60
        $region59: #{tpu_custom_call.1} parent=51 // pred_region
          %s394 = sand.u32 %s24, 1
          %s395 = scalar_lea.sflag [#allocation5], %s394
          %s396 = sand.u32 %s60, 1
          %s397 = smul.addr %s396, 8
          %s398 = scalar_lea.vmem [#allocation4], %s397
          %s400 = ssub.s32 128, 128
          %401 = vsyncadd %s395, %s400
          %s402 = smul.addr %s24, 128
          %s403 = scalar_lea.hbm %s1, %s402
          %s405 = sshll.u32 %s398, 4
          %s406 = int_to_ptr.vmem [resolvable:$true] %s405
          %408 = dma.hbm_to_vmem [thread:$0]  %s403, 128, %s406, %s395
        $region60: #{tpu_custom_call.1} parent=51 // pred_fallthru
          _
        // Predicated region
        $region61: #{tpu_custom_call.1} parent=51 // pred_check
          %p409 = pneg %p96
        $region62: #{tpu_custom_call.1} parent=51 // pred_check_branch
          %411 = sbr.rel (%p409) target = $region64
        $region63: #{tpu_custom_call.1} parent=51 // pred_region
          %p412 = scmp.lt.s32.totalorder %s24, 1
          %s413 = scalar_select %p412, %s24, 1
          %s414 = smul.addr %s413, 8
          %s415 = scalar_lea.vmem %s2, %s414
        $region64: #{tpu_custom_call.1} parent=51 // pred_fallthru
          _
      $region52: #{tpu_custom_call.1} parent=5 // pred_fallthru
        _
      %p416 = scmp.le.s32.totalorder 1, %s24
      %p417 = scmp.lt.s32.totalorder %s24, 3
      %p418 = pnand %p416, %p417
      %p419 = pneg %p418
      // Predicated region
      $region65: #{tpu_custom_call.1} parent=5 // pred_check
        _
      $region66: #{tpu_custom_call.1} parent=5 // pred_check_branch
        %421 = sbr.rel (%p418) target = $region68
      $region67: #{tpu_custom_call.1} parent=5 // pred_region
        %s422 = ssub.s32 %s24, 1
        %s423 = sand.u32 %s37, 1
        %s424 = scalar_lea.sflag [#allocation3], %s423
        %s425 = sand.u32 %s37, 1
        %s426 = smul.addr %s425, 8
        %s427 = scalar_lea.vmem [#allocation2], %s426
        // Predicated region
        $region69: #{tpu_custom_call.1} parent=67 // pred_check
          %p428 = pneg %p50
        $region70: #{tpu_custom_call.1} parent=67 // pred_check_branch
          %430 = sbr.rel (%p428) target = $region72
        $region71: #{tpu_custom_call.1} parent=67 // pred_region
          %431 = dma.done %s424, 128
        $region72: #{tpu_custom_call.1} parent=67 // pred_fallthru
          _
        %s432 = sand.u32 %s29, 1
        %s433 = scalar_lea.sflag [#allocation5], %s432
        %s434 = sand.u32 %s63, 1
        %s435 = smul.addr %s434, 8
        %s436 = scalar_lea.vmem [#allocation4], %s435
        // Predicated region
        $region73: #{tpu_custom_call.1} parent=67 // pred_check
          %p437 = pneg %p76
        $region74: #{tpu_custom_call.1} parent=67 // pred_check_branch
          %439 = sbr.rel (%p437) target = $region76
        $region75: #{tpu_custom_call.1} parent=67 // pred_region
          %440 = dma.done %s433, 128
        $region76: #{tpu_custom_call.1} parent=67 // pred_fallthru
          _
        // Predicated region
        $region77: #{tpu_custom_call.1} parent=67 // pred_check
          %p441 = pneg %p123
        $region78: #{tpu_custom_call.1} parent=67 // pred_check_branch
          %443 = sbr.rel (%p441) target = $region80
        $region79: #{tpu_custom_call.1} parent=67 // pred_region
          %444 = dma.done [#allocation5], 256
        $region80: #{tpu_custom_call.1} parent=67 // pred_fallthru
          _
        %s445 = sand.u32 %s37, 1
        %s446 = scalar_lea.sflag [#allocation3], %s445
        %s447 = sand.u32 %s37, 1
        %s448 = smul.addr %s447, 8
        %s449 = scalar_lea.vmem [#allocation2], %s448
        %p450 = pneg %p50
        %p451 = pneg %p47
        %s452 = sand.u32 %s29, 1
        %s453 = scalar_lea.sflag [#allocation5], %s452
        %s454 = sand.u32 %s63, 1
        %s455 = smul.addr %s454, 8
        %s456 = scalar_lea.vmem [#allocation4], %s455
        %p457 = pneg %p76
        %p458 = pneg %p73
        %p459 = scmp.lt.s32.totalorder %s29, 1
        %s460 = scalar_select %p459, %s29, 1
        %s461 = smul.addr %s460, 8
        %s462 = scalar_lea.vmem %s2, %s461
        %p463 = pneg %p102
        %p464 = pneg %p99
        %p465 = pneg %p123
        %p466 = pneg %p120
        %p467 = pneg %p144
        %p468 = pneg %p141
        %p469 = pneg %p165
        %p470 = pneg %p162
        %p471 = pneg %p186
        %p472 = pneg %p183
        %p473 = pneg %p207
        %p474 = pneg %p204
        %p475 = pneg %p228
        %p476 = pneg %p225
        %p477 = pneg %p249
        %p478 = pneg %p246
        %p479 = pneg %p270
        %p480 = pneg %p267
        %p481 = pneg %p291
        %p482 = pneg %p288
        %p483 = pneg %p317
        %p484 = pneg %p314
        %p485 = scmp.lt.s32.totalorder %s29, 1
        %s486 = scalar_select %p485, %s29, 1
        %s487 = smul.addr %s486, 8
        %s488 = scalar_lea.vmem %s12, %s487
        %p489 = scmp.lt.s32.totalorder %s29, 1
        %s490 = scalar_select %p489, %s29, 1
        %s491 = smul.addr %s490, 8
        %s492 = scalar_lea.vmem %s2, %s491
        %p493 = scmp.lt.s32.totalorder %s29, 1
        %s494 = scalar_select %p493, %s29, 1
        %s495 = smul.addr %s494, 8
        %s496 = scalar_lea.vmem %s12, %s495
        %v498 = vld [vmem:[%s427] sm:$0xff]
        %v499 = vpack.c.bf16 %v498, %v498
        %v500 = vld [vmem:[%s436] sm:$0xff]
        %v501 = vpack.c.bf16 %v500, %v500
        %v502 = vld [vmem:[#allocation6] sm:$0xf]
        %v503 = vld [vmem:[#allocation6 + $0x4] sm:$0xf]
        %v504 = vld [vmem:[#allocation6 + $0x8] sm:$0xf]
        %v505 = vld [vmem:[#allocation6 + $0xc] sm:$0xf]
        %v506 = vld [vmem:[%s4] sm:$0x1]
        %v508 = vlaneseq
        %v509 = vshrl.u32 %v508, 7
        %v510 = vsub.s32 0, %v509
        %v511 = vrot.slane %v506, %v510
        %v517 = vunpack.c.l.b16 %v502
        %v518 = vunpack.c.l.b16 %v503
        %v519 = vunpack.c.l.b16 %v504
        %v520 = vunpack.c.l.b16 %v505
        %v521 = vpack.c.b16 %v518, %v517
        %v522 = vpack.c.b16 %v520, %v519
        %vm525 = vcmask 261120
        %v527 = vsel %vm525, %v499, 0
        %529 = vmatprep.subr.bf16.mxu0 0
        %530 = vmatpush1.bf16.msra.mxu0 %v521
        %531 = vmatprep.subr.bf16.mxu0 0
        %532 = vmatpush1.bf16.msra.mxu0 %v522
        %533 = vmatprep.subr.bf16.mxu0 0
        %534 = vmatpush1.bf16.msra.mxu0 0
        %535 = vmatprep.subr.bf16.mxu0 0
        %536 = vmatpush1.bf16.msra.mxu0 0
        %537 = vmatprep.subr.bf16.mxu0 0
        %538 = vmatpush1.bf16.msra.mxu0 0
        %539 = vmatprep.subr.bf16.mxu0 0
        %540 = vmatpush1.bf16.msra.mxu0 0
        %541 = vmatprep.subr.bf16.mxu0 0
        %542 = vmatpush1.bf16.msra.mxu0 0
        %543 = vmatprep.subr.bf16.mxu0 0
        %544 = vmatpush1.bf16.msra.mxu0 0
        %545 = vmatprep.subr.bf16.mxu0 0
        %546 = vmatpush1.bf16.msra.mxu0 0
        %547 = vmatprep.subr.bf16.mxu0 0
        %548 = vmatpush1.bf16.msra.mxu0 0
        %549 = vmatprep.subr.bf16.mxu0 0
        %550 = vmatpush1.bf16.msra.mxu0 0
        %551 = vmatprep.subr.bf16.mxu0 0
        %552 = vmatpush1.bf16.msra.mxu0 0
        %553 = vmatprep.subr.bf16.mxu0 0
        %554 = vmatpush1.bf16.msra.mxu0 0
        %555 = vmatprep.subr.bf16.mxu0 0
        %556 = vmatpush1.bf16.msra.mxu0 0
        %557 = vmatprep.subr.bf16.mxu0 0
        %558 = vmatpush1.bf16.msra.mxu0 0
        %559 = vmatprep.subr.bf16.mxu0 0
        %560 = vmatpush1.bf16.msra.mxu0 0
        %561 = vmatprep.mubr.bf16.mxu0 0
        %562 = vmatmul.mubr.bf16.gmra.mrb[0].mxu0 %v527
        %v563 = vpop.f32.mrb[0].mxu0
        %v564 = vadd.f32 %v511, %v563
        %v565 = vpop.f32.mrb[0].mxu0
        %v566 = vpop.f32.mrb[0].mxu0
        %v567 = vpop.f32.mrb[0].mxu0
        %568 = vdwg.mxu0
        %v569 = vmax.f32 %v564, 0.0
        %v570 = vld [vmem:[%s5] sm:$0xf]
        %v571 = vld [vmem:[%s5 + $0x4] sm:$0xf]
        %v572 = vld [vmem:[%s6] sm:$0x1]
        %v574 = vlaneseq
        %v575 = vshrl.u32 %v574, 7
        %v576 = vsub.s32 0, %v575
        %v577 = vrot.slane %v572, %v576
        %v581 = vunpack.c.l.b16 %v570
        %v582 = vunpack.c.l.b16 %v571
        %v583 = vpack.c.b16 %v582, %v581
        %vm585 = vcmask 130048
        %v587 = vsel %vm585, %v501, 0
        %589 = vmatprep.subr.bf16.mxu0 0
        %590 = vmatpush1.bf16.msra.mxu0 %v583
        %591 = vmatprep.subr.bf16.mxu0 0
        %592 = vmatpush1.bf16.msra.mxu0 0
        %593 = vmatprep.subr.bf16.mxu0 0
        %594 = vmatpush1.bf16.msra.mxu0 0
        %595 = vmatprep.subr.bf16.mxu0 0
        %596 = vmatpush1.bf16.msra.mxu0 0
        %597 = vmatprep.subr.bf16.mxu0 0
        %598 = vmatpush1.bf16.msra.mxu0 0
        %599 = vmatprep.subr.bf16.mxu0 0
        %600 = vmatpush1.bf16.msra.mxu0 0
        %601 = vmatprep.subr.bf16.mxu0 0
        %602 = vmatpush1.bf16.msra.mxu0 0
        %603 = vmatprep.subr.bf16.mxu0 0
        %604 = vmatpush1.bf16.msra.mxu0 0
        %605 = vmatprep.subr.bf16.mxu0 0
        %606 = vmatpush1.bf16.msra.mxu0 0
        %607 = vmatprep.subr.bf16.mxu0 0
        %608 = vmatpush1.bf16.msra.mxu0 0
        %609 = vmatprep.subr.bf16.mxu0 0
        %610 = vmatpush1.bf16.msra.mxu0 0
        %611 = vmatprep.subr.bf16.mxu0 0
        %612 = vmatpush1.bf16.msra.mxu0 0
        %613 = vmatprep.subr.bf16.mxu0 0
        %614 = vmatpush1.bf16.msra.mxu0 0
        %615 = vmatprep.subr.bf16.mxu0 0
        %616 = vmatpush1.bf16.msra.mxu0 0
        %617 = vmatprep.subr.bf16.mxu0 0
        %618 = vmatpush1.bf16.msra.mxu0 0
        %619 = vmatprep.subr.bf16.mxu0 0
        %620 = vmatpush1.bf16.msra.mxu0 0
        %621 = vmatprep.mubr.bf16.mxu0 0
        %622 = vmatmul.mubr.bf16.gmra.mrb[0].mxu0 %v587
        %v623 = vpop.f32.mrb[0].mxu0
        %v624 = vadd.f32 %v577, %v623
        %v625 = vpop.f32.mrb[0].mxu0
        %v626 = vpop.f32.mrb[0].mxu0
        %v627 = vpop.f32.mrb[0].mxu0
        %628 = vdwg.mxu0
        %v629 = vmax.f32 %v624, 0.0
        %v630 = vpack.c.bf16 %v569, %v569
        %v631 = vld [vmem:[%s7] sm:$0xf]
        %v632 = vld [vmem:[%s7 + $0x4] sm:$0xf]
        %v633 = vld [vmem:[%s7 + $0x8] sm:$0xf]
        %v634 = vld [vmem:[%s7 + $0xc] sm:$0xf]
        %v635 = vld [vmem:[%s7 + $0x10] sm:$0xf]
        %v636 = vld [vmem:[%s7 + $0x14] sm:$0xf]
        %v637 = vld [vmem:[%s7 + $0x18] sm:$0xf]
        %v638 = vld [vmem:[%s7 + $0x1c] sm:$0xf]
        %v639 = vpack.c.bf16 %v629, %v629
        %v640 = vld [vmem:[%s8] sm:$0xf]
        %v641 = vld [vmem:[%s8 + $0x4] sm:$0xf]
        %v642 = vld [vmem:[%s8 + $0x8] sm:$0xf]
        %v643 = vld [vmem:[%s8 + $0xc] sm:$0xf]
        %v644 = vld [vmem:[%s8 + $0x10] sm:$0xf]
        %v645 = vld [vmem:[%s8 + $0x14] sm:$0xf]
        %v646 = vld [vmem:[%s8 + $0x18] sm:$0xf]
        %v647 = vld [vmem:[%s8 + $0x1c] sm:$0xf]
        %v656 = vunpack.c.l.b16 %v640
        %v657 = vunpack.c.l.b16 %v641
        %v658 = vunpack.c.l.b16 %v642
        %v659 = vunpack.c.l.b16 %v643
        %v660 = vunpack.c.l.b16 %v644
        %v661 = vunpack.c.l.b16 %v645
        %v662 = vunpack.c.l.b16 %v646
        %v663 = vunpack.c.l.b16 %v647
        %v664 = vpack.c.b16 %v657, %v656
        %v665 = vpack.c.b16 %v659, %v658
        %v666 = vpack.c.b16 %v661, %v660
        %v667 = vpack.c.b16 %v663, %v662
        %vm672 = vcmask 523264
        %v674 = vsel %vm672, %v639, 0
        %676 = vmatprep.subr.bf16.mxu0 0
        %677 = vmatpush1.bf16.msra.mxu0 %v664
        %678 = vmatprep.subr.bf16.mxu0 0
        %679 = vmatpush1.bf16.msra.mxu0 %v665
        %680 = vmatprep.subr.bf16.mxu0 0
        %681 = vmatpush1.bf16.msra.mxu0 %v666
        %682 = vmatprep.subr.bf16.mxu0 0
        %683 = vmatpush1.bf16.msra.mxu0 %v667
        %684 = vmatprep.subr.bf16.mxu0 0
        %685 = vmatpush1.bf16.msra.mxu0 0
        %686 = vmatprep.subr.bf16.mxu0 0
        %687 = vmatpush1.bf16.msra.mxu0 0
        %688 = vmatprep.subr.bf16.mxu0 0
        %689 = vmatpush1.bf16.msra.mxu0 0
        %690 = vmatprep.subr.bf16.mxu0 0
        %691 = vmatpush1.bf16.msra.mxu0 0
        %692 = vmatprep.subr.bf16.mxu0 0
        %693 = vmatpush1.bf16.msra.mxu0 0
        %694 = vmatprep.subr.bf16.mxu0 0
        %695 = vmatpush1.bf16.msra.mxu0 0
        %696 = vmatprep.subr.bf16.mxu0 0
        %697 = vmatpush1.bf16.msra.mxu0 0
        %698 = vmatprep.subr.bf16.mxu0 0
        %699 = vmatpush1.bf16.msra.mxu0 0
        %700 = vmatprep.subr.bf16.mxu0 0
        %701 = vmatpush1.bf16.msra.mxu0 0
        %702 = vmatprep.subr.bf16.mxu0 0
        %703 = vmatpush1.bf16.msra.mxu0 0
        %704 = vmatprep.subr.bf16.mxu0 0
        %705 = vmatpush1.bf16.msra.mxu0 0
        %706 = vmatprep.subr.bf16.mxu0 0
        %707 = vmatpush1.bf16.msra.mxu0 0
        %708 = vmatprep.mubr.bf16.mxu0 0
        %709 = vmatmul.mubr.bf16.gmra.mrb[0].mxu0 %v674
        %v710 = vpop.f32.mrb[0].mxu0
        %v711 = vadd.f32 0.0, %v710
        %v712 = vpop.f32.mrb[0].mxu0
        %v713 = vpop.f32.mrb[0].mxu0
        %v714 = vpop.f32.mrb[0].mxu0
        %715 = vdwg.mxu0
        %v724 = vunpack.c.l.b16 %v631
        %v725 = vunpack.c.l.b16 %v632
        %v726 = vunpack.c.l.b16 %v633
        %v727 = vunpack.c.l.b16 %v634
        %v728 = vunpack.c.l.b16 %v635
        %v729 = vunpack.c.l.b16 %v636
        %v730 = vunpack.c.l.b16 %v637
        %v731 = vunpack.c.l.b16 %v638
        %v732 = vpack.c.b16 %v725, %v724
        %v733 = vpack.c.b16 %v727, %v726
        %v734 = vpack.c.b16 %v729, %v728
        %v735 = vpack.c.b16 %v731, %v730
        %v741 = vsel %vm672, %v630, 0
        %743 = vmatprep.subr.bf16.mxu0 0
        %744 = vmatpush1.bf16.msra.mxu0 %v732
        %745 = vmatprep.subr.bf16.mxu0 0
        %746 = vmatpush1.bf16.msra.mxu0 %v733
        %747 = vmatprep.subr.bf16.mxu0 0
        %748 = vmatpush1.bf16.msra.mxu0 %v734
        %749 = vmatprep.subr.bf16.mxu0 0
        %750 = vmatpush1.bf16.msra.mxu0 %v735
        %751 = vmatprep.subr.bf16.mxu0 0
        %752 = vmatpush1.bf16.msra.mxu0 0
        %753 = vmatprep.subr.bf16.mxu0 0
        %754 = vmatpush1.bf16.msra.mxu0 0
        %755 = vmatprep.subr.bf16.mxu0 0
        %756 = vmatpush1.bf16.msra.mxu0 0
        %757 = vmatprep.subr.bf16.mxu0 0
        %758 = vmatpush1.bf16.msra.mxu0 0
        %759 = vmatprep.subr.bf16.mxu0 0
        %760 = vmatpush1.bf16.msra.mxu0 0
        %761 = vmatprep.subr.bf16.mxu0 0
        %762 = vmatpush1.bf16.msra.mxu0 0
        %763 = vmatprep.subr.bf16.mxu0 0
        %764 = vmatpush1.bf16.msra.mxu0 0
        %765 = vmatprep.subr.bf16.mxu0 0
        %766 = vmatpush1.bf16.msra.mxu0 0
        %767 = vmatprep.subr.bf16.mxu0 0
        %768 = vmatpush1.bf16.msra.mxu0 0
        %769 = vmatprep.subr.bf16.mxu0 0
        %770 = vmatpush1.bf16.msra.mxu0 0
        %771 = vmatprep.subr.bf16.mxu0 0
        %772 = vmatpush1.bf16.msra.mxu0 0
        %773 = vmatprep.subr.bf16.mxu0 0
        %774 = vmatpush1.bf16.msra.mxu0 0
        %775 = vmatprep.mubr.bf16.mxu0 0
        %776 = vmatmul.mubr.bf16.gmra.mrb[0].mxu0 %v741
        %v777 = vpop.f32.mrb[0].mxu0
        %v778 = vadd.f32 %v711, %v777
        %v779 = vpop.f32.mrb[0].mxu0
        %v780 = vpop.f32.mrb[0].mxu0
        %v781 = vpop.f32.mrb[0].mxu0
        %782 = vdwg.mxu0
        %v783 = vld [vmem:[%s9] sm:$0x1]
        %v785 = vlaneseq
        %v786 = vshrl.u32 %v785, 7
        %v787 = vsub.s32 0, %v786
        %v788 = vrot.slane %v783, %v787
        %v790 = vadd.f32 %v778, %v788
        %v791 = vmax.f32 %v790, 0.0
        %v792 = vpack.c.bf16 %v791, %v791
        %v793 = vld [vmem:[%s10] sm:$0xf]
        %v794 = vld [vmem:[%s10 + $0x4] sm:$0xf]
        %v795 = vld [vmem:[%s10 + $0x8] sm:$0xf]
        %v796 = vld [vmem:[%s10 + $0xc] sm:$0xf]
        %v797 = vld [vmem:[%s10 + $0x10] sm:$0xf]
        %v798 = vld [vmem:[%s10 + $0x14] sm:$0xf]
        %v799 = vld [vmem:[%s10 + $0x18] sm:$0xf]
        %v800 = vld [vmem:[%s10 + $0x1c] sm:$0xf]
        %v801 = vld [vmem:[%s11] sm:$0x1]
        %v803 = vlaneseq
        %v804 = vshrl.u32 %v803, 7
        %v805 = vsub.s32 0, %v804
        %v806 = vrot.slane %v801, %v805
        %v816 = vunpack.c.l.b16 %v793
        %v817 = vunpack.c.l.b16 %v794
        %v818 = vunpack.c.l.b16 %v795
        %v819 = vunpack.c.l.b16 %v796
        %v820 = vunpack.c.l.b16 %v797
        %v821 = vunpack.c.l.b16 %v798
        %v822 = vunpack.c.l.b16 %v799
        %v823 = vunpack.c.l.b16 %v800
        %v824 = vpack.c.b16 %v817, %v816
        %v825 = vpack.c.b16 %v819, %v818
        %v826 = vpack.c.b16 %v821, %v820
        %v827 = vpack.c.b16 %v823, %v822
        %v833 = vsel %vm672, %v792, 0
        %835 = vmatprep.subr.bf16.mxu0 0
        %836 = vmatpush1.bf16.msra.mxu0 %v824
        %837 = vmatprep.subr.bf16.mxu0 0
        %838 = vmatpush1.bf16.msra.mxu0 %v825
        %839 = vmatprep.subr.bf16.mxu0 0
        %840 = vmatpush1.bf16.msra.mxu0 %v826
        %841 = vmatprep.subr.bf16.mxu0 0
        %842 = vmatpush1.bf16.msra.mxu0 %v827
        %843 = vmatprep.subr.bf16.mxu0 0
        %844 = vmatpush1.bf16.msra.mxu0 0
        %845 = vmatprep.subr.bf16.mxu0 0
        %846 = vmatpush1.bf16.msra.mxu0 0
        %847 = vmatprep.subr.bf16.mxu0 0
        %848 = vmatpush1.bf16.msra.mxu0 0
        %849 = vmatprep.subr.bf16.mxu0 0
        %850 = vmatpush1.bf16.msra.mxu0 0
        %851 = vmatprep.subr.bf16.mxu0 0
        %852 = vmatpush1.bf16.msra.mxu0 0
        %853 = vmatprep.subr.bf16.mxu0 0
        %854 = vmatpush1.bf16.msra.mxu0 0
        %855 = vmatprep.subr.bf16.mxu0 0
        %856 = vmatpush1.bf16.msra.mxu0 0
        %857 = vmatprep.subr.bf16.mxu0 0
        %858 = vmatpush1.bf16.msra.mxu0 0
        %859 = vmatprep.subr.bf16.mxu0 0
        %860 = vmatpush1.bf16.msra.mxu0 0
        %861 = vmatprep.subr.bf16.mxu0 0
        %862 = vmatpush1.bf16.msra.mxu0 0
        %863 = vmatprep.subr.bf16.mxu0 0
        %864 = vmatpush1.bf16.msra.mxu0 0
        %865 = vmatprep.subr.bf16.mxu0 0
        %866 = vmatpush1.bf16.msra.mxu0 0
        %867 = vmatprep.mubr.bf16.mxu0 0
        %868 = vmatmul.mubr.bf16.gmra.mrb[0].mxu0 %v833
        %v869 = vpop.f32.mrb[0].mxu0
        %v870 = vadd.f32 %v806, %v869
        %v871 = vpop.f32.mrb[0].mxu0
        %v872 = vpop.f32.mrb[0].mxu0
        %v873 = vpop.f32.mrb[0].mxu0
        %874 = vdwg.mxu0
        %v875 = vld [vmem:[%s492] sm:$0xff]
        %v876 = vadd.f32 %v875, %v870
        %vm877 = vcmask 64512
        %878 = vst.msk [vmem:[%s496] sm:$0xff] %vm877, %v876
        %p879 = scmp.lt.s32.totalorder %s29, 1
        %s880 = scalar_select %p879, %s29, 1
        %s881 = smul.addr %s880, 8
        %s882 = scalar_lea.vmem %s12, %s881
        // Predicated region
        $region81: #{tpu_custom_call.1} parent=67 // pred_check
          %p883 = pneg %p314
        $region82: #{tpu_custom_call.1} parent=67 // pred_check_branch
          %885 = sbr.rel (%p883) target = $region84
        $region83: #{tpu_custom_call.1} parent=67 // pred_region
          _
        $region84: #{tpu_custom_call.1} parent=67 // pred_fallthru
          _
      $region68: #{tpu_custom_call.1} parent=5 // pred_fallthru
        _
      %p886 = scmp.le.s32.totalorder 2, %s24
      // Predicated region
      $region85: #{tpu_custom_call.1} parent=5 // pred_check
        %p887 = pneg %p886
      $region86: #{tpu_custom_call.1} parent=5 // pred_check_branch
        %889 = sbr.rel (%p887) target = $region88
      $region87: #{tpu_custom_call.1} parent=5 // pred_region
        %s890 = ssub.s32 %s24, 2
        // Predicated region
        $region89: #{tpu_custom_call.1} parent=87 // pred_check
          %p891 = pneg %p320
        $region90: #{tpu_custom_call.1} parent=87 // pred_check_branch
          %893 = sbr.rel (%p891) target = $region92
        $region91: #{tpu_custom_call.1} parent=87 // pred_region
          %p894 = scmp.lt.s32.totalorder %s30, 1
          %s895 = scalar_select %p894, %s30, 1
          %s896 = smul.addr %s895, 8
          %s897 = scalar_lea.vmem %s12, %s896
        $region92: #{tpu_custom_call.1} parent=87 // pred_fallthru
          _
      $region88: #{tpu_custom_call.1} parent=5 // pred_fallthru
        _
    $region6: #{tpu_custom_call.1} parent=1 // loop_footer
      %s28 = sadd.s32 1, %s24
    $region7: #{tpu_custom_call.1} parent=1 // loop_footer_branch
      %23 = sbr.rel target = $region3
    $region8: #{tpu_custom_call.1} parent=1 // loop_exit
      _
    %898 = vsyncpa [#allocation3], 1
    %s899 = scalar_lea.sflag [#allocation3], 1
    %900 = vsyncpa %s899, 1
    %901 = vsyncpa [#allocation5], 1
    %s902 = scalar_lea.sflag [#allocation5], 1
    %903 = vsyncpa %s902, 1

</llo_original>
